<compile_context>
chip_gen: v6e
topology: v6e:2x2x1
jax: 0.10.0
libtpu: 0.0.40
codegen_flags: <defaults>
</compile_context>

<pallas_src>
import math

import jax
import jax.numpy as jnp
import numpy as np
from jax.experimental import pallas as pl
from jax.experimental.pallas import tpu as pltpu

# ----------------------------- configuration --------------------------------
IN_FEATURES = 2
OUT_FEATURES = 32
HIDDEN = [32, 32]
NUM_FOURIER = 4
B = 16                                   # batch (height_patches * width_patches)

FF_DIM = 2 * NUM_FOURIER * IN_FEATURES   # 16
F0 = IN_FEATURES + FF_DIM                # 18 (first Linear's fan-in)


# ------------------------------- kernel -------------------------------------
def interpolation_mlp_kernel(x_ref, coef_ref, off_ref,
                             w1x_ref, w1f_ref, b1_ref,
                             w2_ref, b2_ref,
                             w3_ref, b3_ref,
                             o_ref):
    xT = x_ref[...]                          # (IN, TB)   batch on the lane axis
    coef = coef_ref[...]                     # (2*nf, 1)  freq^2 (sin block | cos block)
    off = off_ref[...]                       # (2*nf, 1)  0 for sin rows, pi/2 for cos rows

    # Fourier features, transposed: ff[i*2nf + k, b].
    # Phases via VPU broadcast-mul (no tiny-K MXU matmul); cos via +pi/2 offset
    # so there is exactly ONE transcendental per Fourier element.
    ff = jnp.concatenate(
        [jnp.sin(xT[i:i + 1, :] * coef + off) for i in range(IN_FEATURES)],
        axis=0)                              # (FF_DIM, TB), tile-aligned blocks of 8

    # Layer 1: concat([x, ff], -1) @ W1 + b1, in transposed form.
    # ff part: K=16 MXU matmul.  x part (K=2): cheaper as VPU broadcast mul-adds.
    w1x = w1x_ref[...]                       # (H0, IN)
    h = jnp.dot(w1f_ref[...], ff, preferred_element_type=jnp.float32) + b1_ref[...]
    for i in range(IN_FEATURES):
        h = h + w1x[:, i:i + 1] * xT[i:i + 1, :]
    h = jnp.maximum(h, 0.0)                  # ReLU

    # Layer 2
    h = jnp.dot(w2_ref[...], h, preferred_element_type=jnp.float32) + b2_ref[...]
    h = jnp.maximum(h, 0.0)                  # ReLU

    # Output layer (no activation)
    o = jnp.dot(w3_ref[...], h, preferred_element_type=jnp.float32) + b3_ref[...]
    o_ref[...] = o.astype(o_ref.dtype)       # (OUT, TB) lane-dense store


# ------------------------------- wrapper -------------------------------------
def interpolation_mlp(x, params, tb=None):
    """x: (B, IN_FEATURES) float32.  Returns (B, OUT_FEATURES) float32."""
    coef, off, w1x_t, w1f_t, b1_t, w2_t, b2_t, w3_t, b3_t = params
    b = x.shape[0]
    if tb is None:
        # TB must be a multiple of 128 (lane-dense).  For production B (image
        # patch grids can be thousands of rows) use 512-2048; on v7x keep the
        # grid >= 2 steps so both TensorCores get work.
        tb = 512 if b >= 1024 else 128
    bp = pl.cdiv(b, tb) * tb
    nb = bp // tb

    # Batch-on-lanes layout: pad batch up to a multiple of TB, features on the
    # (tiny) sublane axis.  Wrapper-side transpose is layout plumbing only.
    x_t = jnp.pad(x, ((0, bp - b), (0, 0))).T            # (IN, Bp)

    full = lambda *s: pl.BlockSpec(s, lambda i: (0,) * len(s))
    grid_spec = pltpu.PrefetchScalarGridSpec(
        num_scalar_prefetch=0,
        grid=(nb,),
        in_specs=[
            pl.BlockSpec((IN_FEATURES, tb), lambda i: (0, i)),   # x^T tile
            full(2 * NUM_FOURIER, 1),                            # phase coef
            full(2 * NUM_FOURIER, 1),                            # phase offset
            full(HIDDEN[0], IN_FEATURES),                        # W1^T (x rows)
            full(HIDDEN[0], FF_DIM),                             # W1^T (ff rows)
            full(HIDDEN[0], 1),                                  # b1
            full(HIDDEN[1], HIDDEN[0]),                          # W2^T
            full(HIDDEN[1], 1),                                  # b2
            full(OUT_FEATURES, HIDDEN[1]),                       # W3^T
            full(OUT_FEATURES, 1),                               # b3
        ],
        out_specs=pl.BlockSpec((OUT_FEATURES, tb), lambda i: (0, i)),
    )
    out_t = pl.pallas_call(
        interpolation_mlp_kernel,
        out_shape=jax.ShapeDtypeStruct((OUT_FEATURES, bp), jnp.float32),
        grid_spec=grid_spec,
        compiler_params=pltpu.CompilerParams(
            dimension_semantics=("parallel",)),
    )(x_t, coef, off, w1x_t, w1f_t, b1_t, w2_t, b2_t, w3_t, b3_t)
    return out_t.T[:b]                                    # back to (B, OUT)


# --------------------------- parameter construction ---------------------------
def make_params(key):
    ks = jax.random.split(key, 3)

    # Phase coefficients / offsets (constants, not learned).
    # PyTorch ff layout per input feature i: [sin_0..sin_{nf-1}, cos_0..cos_{nf-1}],
    # with phase x_i * freq_j^2, freq_j = j*pi.  cos folded into sin via +pi/2.
    freqs = jnp.arange(NUM_FOURIER, dtype=jnp.float32) * math.pi
    fsq = freqs * freqs
    coef = jnp.concatenate([fsq, fsq]).reshape(2 * NUM_FOURIER, 1)
    off = jnp.concatenate(
        [jnp.zeros((NUM_FOURIER,), jnp.float32),
         jnp.full((NUM_FOURIER,), 0.5 * math.pi, jnp.float32)]
    ).reshape(2 * NUM_FOURIER, 1)

    def linear(k, fan_in, fan_out):
        kw, kb = jax.random.split(k)
        w = jax.random.normal(kw, (fan_in, fan_out), jnp.float32) / math.sqrt(fan_in)
        b = 0.1 * jax.random.normal(kb, (fan_out,), jnp.float32)
        return w, b

    w1, b1 = linear(ks[0], F0, HIDDEN[0])
    w2, b2 = linear(ks[1], HIDDEN[0], HIDDEN[1])
    w3, b3 = linear(ks[2], HIDDEN[1], OUT_FEATURES)

    # Kernel params are stored transposed (out, in) so the kernel computes
    # h^T = W^T @ x^T; W1 is split row-wise to realize the concat([x, ff]).
    kernel_params = (
        coef, off,
        w1[:IN_FEATURES].T,        # (H0, IN)
        w1[IN_FEATURES:].T,        # (H0, FF_DIM)
        b1.reshape(-1, 1),         # (H0, 1)
        w2.T, b2.reshape(-1, 1),   # (H1, H0), (H1, 1)
        w3.T, b3.reshape(-1, 1),   # (OUT, H1), (OUT, 1)
    )
    dense_params = (w1, b1, w2, b2, w3, b3)
    return kernel_params, dense_params


# ------------------------------ pure-JAX reference ----------------------------
def ref_forward(x, dense_params):
    w1, b1, w2, b2, w3, b3 = dense_params
    freqs = jnp.arange(NUM_FOURIER, dtype=jnp.float32) * math.pi
    xe = jnp.einsum('bi,j->bij', x, freqs)                           # (B, IN, nf)
    ff = jnp.concatenate([jnp.sin(xe * freqs), jnp.cos(xe * freqs)], axis=-1)
    ff = ff.reshape(x.shape[0], -1)                                  # (B, FF_DIM)
    h = jnp.concatenate([x, ff], axis=-1)                            # (B, F0)
    h = jnp.maximum(h @ w1 + b1, 0.0)
    h = jnp.maximum(h @ w2 + b2, 0.0)
    return h @ w3 + b3


# ----------------------------------- main -------------------------------------
if __name__ == "__main__":
    key = jax.random.PRNGKey(0)
    kx, kp = jax.random.split(key)

    # Inputs: like `interpolate()`, coordinates in [-1, 1], shape (B, in_features).
    x = jax.random.uniform(kx, (B, IN_FEATURES), jnp.float32, minval=-1.0, maxval=1.0)

    kernel_params, dense_params = make_params(kp)

    out = interpolation_mlp(x, kernel_params)
    out = jax.block_until_ready(out)

    ref = ref_forward(x, dense_params)
    # Tolerance covers f32 rounding of the sin(theta + pi/2) == cos(theta) identity.
    np.testing.assert_allclose(np.asarray(out), np.asarray(ref), rtol=5e-4, atol=5e-4)

    print("KERNEL_OK")
</pallas_src>

<mosaic_0001>
module attributes {stable_mosaic.version = 11 : i64} {
  func.func @interpolation_mlp_kernel(%arg0: i32, %arg1: memref<2x128xf32, #tpu.memory_space<vmem>>, %arg2: memref<8x1xf32, #tpu.memory_space<vmem>>, %arg3: memref<8x1xf32, #tpu.memory_space<vmem>>, %arg4: memref<32x2xf32, #tpu.memory_space<vmem>>, %arg5: memref<32x16xf32, #tpu.memory_space<vmem>>, %arg6: memref<32x1xf32, #tpu.memory_space<vmem>>, %arg7: memref<32x32xf32, #tpu.memory_space<vmem>>, %arg8: memref<32x1xf32, #tpu.memory_space<vmem>>, %arg9: memref<32x32xf32, #tpu.memory_space<vmem>>, %arg10: memref<32x1xf32, #tpu.memory_space<vmem>>, %arg11: memref<32x128xf32, #tpu.memory_space<vmem>>) attributes {dimension_semantics = [#tpu.dimension_semantics<parallel>], iteration_bounds = array<i64: 1>, scalar_prefetch = 0 : i64, scratch_operands = 0 : i64, tpu.core_type = #tpu.core_type<tc>, window_params = [{transform_indices = @transform_0, window_bounds = array<i64: 2, 128>}, {pipeline_mode = #tpu.pipeline_mode<synchronous>, transform_indices = @transform_1, window_bounds = array<i64: 8, 1>}, {pipeline_mode = #tpu.pipeline_mode<synchronous>, transform_indices = @transform_2, window_bounds = array<i64: 8, 1>}, {pipeline_mode = #tpu.pipeline_mode<synchronous>, transform_indices = @transform_3, window_bounds = array<i64: 32, 2>}, {pipeline_mode = #tpu.pipeline_mode<synchronous>, transform_indices = @transform_4, window_bounds = array<i64: 32, 16>}, {pipeline_mode = #tpu.pipeline_mode<synchronous>, transform_indices = @transform_5, window_bounds = array<i64: 32, 1>}, {pipeline_mode = #tpu.pipeline_mode<synchronous>, transform_indices = @transform_6, window_bounds = array<i64: 32, 32>}, {pipeline_mode = #tpu.pipeline_mode<synchronous>, transform_indices = @transform_7, window_bounds = array<i64: 32, 1>}, {pipeline_mode = #tpu.pipeline_mode<synchronous>, transform_indices = @transform_8, window_bounds = array<i64: 32, 32>}, {pipeline_mode = #tpu.pipeline_mode<synchronous>, transform_indices = @transform_9, window_bounds = array<i64: 32, 1>}, {transform_indices = @transform_10, window_bounds = array<i64: 32, 128>}]} {
    %c0 = arith.constant 0 : index
    %c0_0 = arith.constant 0 : index
    %0 = vector.load %arg1[%c0, %c0_0] : memref<2x128xf32, #tpu.memory_space<vmem>>, vector<2x128xf32>
    %c0_1 = arith.constant 0 : index
    %c0_2 = arith.constant 0 : index
    %1 = vector.load %arg2[%c0_1, %c0_2] : memref<8x1xf32, #tpu.memory_space<vmem>>, vector<8x1xf32>
    %c0_3 = arith.constant 0 : index
    %c0_4 = arith.constant 0 : index
    %2 = vector.load %arg3[%c0_3, %c0_4] : memref<8x1xf32, #tpu.memory_space<vmem>>, vector<8x1xf32>
    %3 = vector.extract_strided_slice %0 {offsets = [0, 0], sizes = [1, 128], strides = [1, 1]} : vector<2x128xf32> to vector<1x128xf32>
    %4 = vector.broadcast %3 : vector<1x128xf32> to vector<8x128xf32>
    %5 = vector.broadcast %1 : vector<8x1xf32> to vector<8x128xf32>
    %6 = arith.mulf %4, %5 : vector<8x128xf32>
    %7 = vector.broadcast %2 : vector<8x1xf32> to vector<8x128xf32>
    %8 = arith.addf %6, %7 : vector<8x128xf32>
    %9 = math.sin %8 : vector<8x128xf32>
    %10 = vector.extract_strided_slice %0 {offsets = [1, 0], sizes = [1, 128], strides = [1, 1]} : vector<2x128xf32> to vector<1x128xf32>
    %11 = vector.broadcast %10 : vector<1x128xf32> to vector<8x128xf32>
    %12 = vector.broadcast %1 : vector<8x1xf32> to vector<8x128xf32>
    %13 = arith.mulf %11, %12 : vector<8x128xf32>
    %14 = vector.broadcast %2 : vector<8x1xf32> to vector<8x128xf32>
    %15 = arith.addf %13, %14 : vector<8x128xf32>
    %16 = math.sin %15 : vector<8x128xf32>
    %17 = tpu.concatenate %9, %16 in 0 : vector<8x128xf32>, vector<8x128xf32> -> vector<16x128xf32>
    %c0_5 = arith.constant 0 : index
    %c0_6 = arith.constant 0 : index
    %18 = vector.load %arg4[%c0_5, %c0_6] : memref<32x2xf32, #tpu.memory_space<vmem>>, vector<32x2xf32>
    %c0_7 = arith.constant 0 : index
    %c0_8 = arith.constant 0 : index
    %19 = vector.load %arg5[%c0_7, %c0_8] : memref<32x16xf32, #tpu.memory_space<vmem>>, vector<32x16xf32>
    %cst = arith.constant dense<0.000000e+00> : vector<32x128xf32>
    %20 = tpu.matmul %19, %17, %cst {dimension_numbers = #tpu.dot_dimension_numbers<[1], [0], [0], [1], [0, 0, 1, 1], [], []>} : vector<32x16xf32>, vector<16x128xf32>, vector<32x128xf32> -> vector<32x128xf32>
    %c0_9 = arith.constant 0 : index
    %c0_10 = arith.constant 0 : index
    %21 = vector.load %arg6[%c0_9, %c0_10] : memref<32x1xf32, #tpu.memory_space<vmem>>, vector<32x1xf32>
    %22 = vector.broadcast %21 : vector<32x1xf32> to vector<32x128xf32>
    %23 = arith.addf %20, %22 : vector<32x128xf32>
    %24 = vector.extract_strided_slice %18 {offsets = [0, 0], sizes = [32, 1], strides = [1, 1]} : vector<32x2xf32> to vector<32x1xf32>
    %25 = vector.extract_strided_slice %0 {offsets = [0, 0], sizes = [1, 128], strides = [1, 1]} : vector<2x128xf32> to vector<1x128xf32>
    %26 = vector.broadcast %24 : vector<32x1xf32> to vector<32x128xf32>
    %27 = vector.broadcast %25 : vector<1x128xf32> to vector<32x128xf32>
    %28 = arith.mulf %26, %27 : vector<32x128xf32>
    %29 = arith.addf %23, %28 : vector<32x128xf32>
    %30 = vector.extract_strided_slice %18 {offsets = [0, 1], sizes = [32, 1], strides = [1, 1]} : vector<32x2xf32> to vector<32x1xf32>
    %31 = vector.extract_strided_slice %0 {offsets = [1, 0], sizes = [1, 128], strides = [1, 1]} : vector<2x128xf32> to vector<1x128xf32>
    %32 = vector.broadcast %30 : vector<32x1xf32> to vector<32x128xf32>
    %33 = vector.broadcast %31 : vector<1x128xf32> to vector<32x128xf32>
    %34 = arith.mulf %32, %33 : vector<32x128xf32>
    %35 = arith.addf %29, %34 : vector<32x128xf32>
    %cst_11 = arith.constant 0.000000e+00 : f32
    %36 = vector.broadcast %cst_11 : f32 to vector<32x128xf32>
    %37 = arith.maximumf %35, %36 : vector<32x128xf32>
    %c0_12 = arith.constant 0 : index
    %c0_13 = arith.constant 0 : index
    %38 = vector.load %arg7[%c0_12, %c0_13] : memref<32x32xf32, #tpu.memory_space<vmem>>, vector<32x32xf32>
    %cst_14 = arith.constant dense<0.000000e+00> : vector<32x128xf32>
    %39 = tpu.matmul %38, %37, %cst_14 {dimension_numbers = #tpu.dot_dimension_numbers<[1], [0], [0], [1], [0, 0, 1, 1], [], []>} : vector<32x32xf32>, vector<32x128xf32>, vector<32x128xf32> -> vector<32x128xf32>
    %c0_15 = arith.constant 0 : index
    %c0_16 = arith.constant 0 : index
    %40 = vector.load %arg8[%c0_15, %c0_16] : memref<32x1xf32, #tpu.memory_space<vmem>>, vector<32x1xf32>
    %41 = vector.broadcast %40 : vector<32x1xf32> to vector<32x128xf32>
    %42 = arith.addf %39, %41 : vector<32x128xf32>
    %cst_17 = arith.constant 0.000000e+00 : f32
    %43 = vector.broadcast %cst_17 : f32 to vector<32x128xf32>
    %44 = arith.maximumf %42, %43 : vector<32x128xf32>
    %c0_18 = arith.constant 0 : index
    %c0_19 = arith.constant 0 : index
    %45 = vector.load %arg9[%c0_18, %c0_19] : memref<32x32xf32, #tpu.memory_space<vmem>>, vector<32x32xf32>
    %cst_20 = arith.constant dense<0.000000e+00> : vector<32x128xf32>
    %46 = tpu.matmul %45, %44, %cst_20 {dimension_numbers = #tpu.dot_dimension_numbers<[1], [0], [0], [1], [0, 0, 1, 1], [], []>} : vector<32x32xf32>, vector<32x128xf32>, vector<32x128xf32> -> vector<32x128xf32>
    %c0_21 = arith.constant 0 : index
    %c0_22 = arith.constant 0 : index
    %47 = vector.load %arg10[%c0_21, %c0_22] : memref<32x1xf32, #tpu.memory_space<vmem>>, vector<32x1xf32>
    %48 = vector.broadcast %47 : vector<32x1xf32> to vector<32x128xf32>
    %49 = arith.addf %46, %48 : vector<32x128xf32>
    %c0_23 = arith.constant 0 : index
    %c0_24 = arith.constant 0 : index
    %50 = vector.load %arg11[%c0_23, %c0_24] : memref<32x128xf32, #tpu.memory_space<vmem>>, vector<32x128xf32>
    tpu.vector_store %arg11[%c0_23, %c0_24], %49 {strides = array<i32>} : memref<32x128xf32, #tpu.memory_space<vmem>>, vector<32x128xf32>,
    return
  }
  func.func @transform_0(%arg0: i32) -> (i32, i32) {
    %c0_i32 = arith.constant 0 : i32
    %c0_i32_0 = arith.constant 0 : i32
    return %c0_i32, %arg0 : i32, i32
  }
  func.func @transform_1(%arg0: i32) -> (i32, i32) {
    %c0_i32 = arith.constant 0 : i32
    %c0_i32_0 = arith.constant 0 : i32
    %c0_i32_1 = arith.constant 0 : i32
    return %c0_i32, %c0_i32_0 : i32, i32
  }
  func.func @transform_2(%arg0: i32) -> (i32, i32) {
    %c0_i32 = arith.constant 0 : i32
    %c0_i32_0 = arith.constant 0 : i32
    %c0_i32_1 = arith.constant 0 : i32
    return %c0_i32, %c0_i32_0 : i32, i32
  }
  func.func @transform_3(%arg0: i32) -> (i32, i32) {
    %c0_i32 = arith.constant 0 : i32
    %c0_i32_0 = arith.constant 0 : i32
    %c0_i32_1 = arith.constant 0 : i32
    return %c0_i32, %c0_i32_0 : i32, i32
  }
  func.func @transform_4(%arg0: i32) -> (i32, i32) {
    %c0_i32 = arith.constant 0 : i32
    %c0_i32_0 = arith.constant 0 : i32
    %c0_i32_1 = arith.constant 0 : i32
    return %c0_i32, %c0_i32_0 : i32, i32
  }
  func.func @transform_5(%arg0: i32) -> (i32, i32) {
    %c0_i32 = arith.constant 0 : i32
    %c0_i32_0 = arith.constant 0 : i32
    %c0_i32_1 = arith.constant 0 : i32
    return %c0_i32, %c0_i32_0 : i32, i32
  }
  func.func @transform_6(%arg0: i32) -> (i32, i32) {
    %c0_i32 = arith.constant 0 : i32
    %c0_i32_0 = arith.constant 0 : i32
    %c0_i32_1 = arith.constant 0 : i32
    return %c0_i32, %c0_i32_0 : i32, i32
  }
  func.func @transform_7(%arg0: i32) -> (i32, i32) {
    %c0_i32 = arith.constant 0 : i32
    %c0_i32_0 = arith.constant 0 : i32
    %c0_i32_1 = arith.constant 0 : i32
    return %c0_i32, %c0_i32_0 : i32, i32
  }
  func.func @transform_8(%arg0: i32) -> (i32, i32) {
    %c0_i32 = arith.constant 0 : i32
    %c0_i32_0 = arith.constant 0 : i32
    %c0_i32_1 = arith.constant 0 : i32
    return %c0_i32, %c0_i32_0 : i32, i32
  }
  func.func @transform_9(%arg0: i32) -> (i32, i32) {
    %c0_i32 = arith.constant 0 : i32
    %c0_i32_0 = arith.constant 0 : i32
    %c0_i32_1 = arith.constant 0 : i32
    return %c0_i32, %c0_i32_0 : i32, i32
  }
  func.func @transform_10(%arg0: i32) -> (i32, i32) {
    %c0_i32 = arith.constant 0 : i32
    %c0_i32_0 = arith.constant 0 : i32
    return %c0_i32, %arg0 : i32, i32
  }
}

</mosaic_0001>

<llo_original>
// kernel: tpu_custom_call.1
$region0: #{tpu_custom_call.1}
  #allocation0 [shape = 'u32[]', space=smem, size = 0x4, offset = 0x4, fixed_abs, tag = 'smem constant byte address 0x4 - core index']
  #allocation1 [shape = 'u32[144,128]{1,0:T(1,128)}', space=vmem, size = 0x12000, scoped, tag = 'internal scratch']
  %s0 = inlined_call_operand.vmem [shape: f32[2,128], index: 0, kind: input, shape index: {}]
  %s1 = inlined_call_operand.vmem [shape: f32[8,1], index: 1, kind: input, shape index: {}]
  %s2 = inlined_call_operand.vmem [shape: f32[8,1], index: 2, kind: input, shape index: {}]
  %s3 = inlined_call_operand.vmem [shape: f32[32,2], index: 3, kind: input, shape index: {}]
  %s4 = inlined_call_operand.vmem [shape: f32[32,16], index: 4, kind: input, shape index: {}]
  %s5 = inlined_call_operand.vmem [shape: f32[32,1], index: 5, kind: input, shape index: {}]
  %s6 = inlined_call_operand.vmem [shape: f32[32,32], index: 6, kind: input, shape index: {}]
  %s7 = inlined_call_operand.vmem [shape: f32[32,1], index: 7, kind: input, shape index: {}]
  %s8 = inlined_call_operand.vmem [shape: f32[32,32], index: 8, kind: input, shape index: {}]
  %s9 = inlined_call_operand.vmem [shape: f32[32,1], index: 9, kind: input, shape index: {}]
  %s10 = inlined_call_operand.hbm [shape: f32[32,128], index: 10, kind: output, shape index: {}]
  %s11 = sld [smem:[#allocation0]]
  $region50: #{tpu_custom_call.1} parent=0
    _
  %s13 = ssub.s32 1, %s11
  %s14 = scalar_select 0, %s13, %s11
  $region1: #{tpu_custom_call.1} parent=0
    #allocation2 [shape = 'u8[16384]{0}', space=vmem, size = 0x4000, scoped, tag = 'output window, operand 0, single buffered']
    #allocation3 [shape = 's32[1]{0}', space=sflag, size = 0x4, scoped, tag = 'scoped memory for tpu_custom_call.1']
    %15 = vsyncpa [#allocation3], 0
    // Predicated region
    $region2: #{tpu_custom_call.1} parent=1 // pred_check
      _
    $region3: #{tpu_custom_call.1} parent=1 // pred_check_branch
      %17 = sbr.rel (0) target = $region5
    $region4: #{tpu_custom_call.1} parent=1 // pred_region
      _
    $region5: #{tpu_custom_call.1} parent=1 // pred_fallthru
      _
    // Predicated region
    $region6: #{tpu_custom_call.1} parent=1 // pred_check
      _
    $region7: #{tpu_custom_call.1} parent=1 // pred_check_branch
      %19 = sbr.rel (0) target = $region9
    $region8: #{tpu_custom_call.1} parent=1 // pred_region
      _
    $region9: #{tpu_custom_call.1} parent=1 // pred_fallthru
      _
    // Predicated region
    $region10: #{tpu_custom_call.1} parent=1 // pred_check
      _
    $region11: #{tpu_custom_call.1} parent=1 // pred_check_branch
      %21 = sbr.rel (0) target = $region13
    $region12: #{tpu_custom_call.1} parent=1 // pred_region
      _
    $region13: #{tpu_custom_call.1} parent=1 // pred_fallthru
      _
    // Predicated region
    $region14: #{tpu_custom_call.1} parent=1 // pred_check
      _
    $region15: #{tpu_custom_call.1} parent=1 // pred_check_branch
      %23 = sbr.rel (0) target = $region17
    $region16: #{tpu_custom_call.1} parent=1 // pred_region
      _
    $region17: #{tpu_custom_call.1} parent=1 // pred_fallthru
      _
    // Predicated region
    $region18: #{tpu_custom_call.1} parent=1 // pred_check
      _
    $region19: #{tpu_custom_call.1} parent=1 // pred_check_branch
      %25 = sbr.rel (0) target = $region21
    $region20: #{tpu_custom_call.1} parent=1 // pred_region
      _
    $region21: #{tpu_custom_call.1} parent=1 // pred_fallthru
      _
    // Predicated region
    $region22: #{tpu_custom_call.1} parent=1 // pred_check
      _
    $region23: #{tpu_custom_call.1} parent=1 // pred_check_branch
      %27 = sbr.rel (0) target = $region25
    $region24: #{tpu_custom_call.1} parent=1 // pred_region
      _
    $region25: #{tpu_custom_call.1} parent=1 // pred_fallthru
      _
    // Predicated region
    $region26: #{tpu_custom_call.1} parent=1 // pred_check
      _
    $region27: #{tpu_custom_call.1} parent=1 // pred_check_branch
      %29 = sbr.rel (0) target = $region29
    $region28: #{tpu_custom_call.1} parent=1 // pred_region
      _
    $region29: #{tpu_custom_call.1} parent=1 // pred_fallthru
      _
    // Predicated region
    $region30: #{tpu_custom_call.1} parent=1 // pred_check
      _
    $region31: #{tpu_custom_call.1} parent=1 // pred_check_branch
      %31 = sbr.rel (0) target = $region33
    $region32: #{tpu_custom_call.1} parent=1 // pred_region
      _
    $region33: #{tpu_custom_call.1} parent=1 // pred_fallthru
      _
    // Predicated region
    $region34: #{tpu_custom_call.1} parent=1 // pred_check
      _
    $region35: #{tpu_custom_call.1} parent=1 // pred_check_branch
      %33 = sbr.rel (0) target = $region37
    $region36: #{tpu_custom_call.1} parent=1 // pred_region
      _
    $region37: #{tpu_custom_call.1} parent=1 // pred_fallthru
      _
    // Predicated region
    $region38: #{tpu_custom_call.1} parent=1 // pred_check
      _
    $region39: #{tpu_custom_call.1} parent=1 // pred_check_branch
      %35 = sbr.rel (0) target = $region41
    $region40: #{tpu_custom_call.1} parent=1 // pred_region
      _
    $region41: #{tpu_custom_call.1} parent=1 // pred_fallthru
      _
    %v36 = vld [vmem:[%s0] sm:$0x3]
    %v37 = vld [vmem:[%s1] sm:$0xff]
    %v38 = vld [vmem:[%s2] sm:$0xff]
    %v39 = vlaneseq
    %v40 = vshrl.u32 %v39, 7
    %v41 = vsub.s32 0, %v40
    %v42 = vrot.slane %v36, %v41
    %44 = vset.pattern.permute.xlu0 0
    %45 = vperm.xlu0 %44, %v37
    %v46 = vpop.permute.xlu0 %45
    %v48 = vmul.f32 %v42, %v46
    %50 = vset.pattern.permute.xlu0 0
    %51 = vperm.xlu0 %50, %v38
    %v52 = vpop.permute.xlu0 %51
    %v54 = vadd.f32 %v48, %v52
    %v55 = vand.u32 2147483647, %v54
    %vm56 = vcmp.le.f32.partialorder %v55, 0.7853982
    %vm57 = vcmp.lt.s32.totalorder %v54, 0
    %v58 = vand.u32 %v54, 2139095040
    %v59 = vshrl.u32 %v58, 23
    %v60 = vsub.s32 %v59, 127
    %v61 = vand.u32 2147483647, %v54
    %v62 = vand.u32 %v61, 8388607
    %v63 = vor.u32 %v62, 8388608
    %v64 = vsub.s32 0, %v63
    %v65 = vadd.s32 %v60, 1
    %vm66 = vcmp.gt.s32.totalorder %v65, 0
    %v67 = vsel %vm66, %v65, 0
    %v68 = vshrl.u32 %v67, 5
    %v69 = vand.u32 %v67, 31
    %v70 = vsub.s32 32, %v69
    %v71 = vshrl.u32 683565275, %v70
    %v72 = vshll.u32 683565275, %v69
    %v73 = vshrl.u32 2475754826, %v70
    %v74 = vor.u32 %v72, %v73
    %v75 = vshll.u32 2475754826, %v69
    %v76 = vshrl.u32 2131351028, %v70
    %v77 = vor.u32 %v75, %v76
    %v78 = vshll.u32 2131351028, %v69
    %v79 = vshrl.u32 2102212464, %v70
    %v80 = vor.u32 %v78, %v79
    %v81 = vshll.u32 2102212464, %v69
    %v82 = vshrl.u32 920167782, %v70
    %v83 = vor.u32 %v81, %v82
    %v84 = vshll.u32 920167782, %v69
    %v85 = vshrl.u32 1326507024, %v70
    %v86 = vor.u32 %v84, %v85
    %vm87 = vcmp.lt.s32.totalorder %v68, 1
    %vm88 = vcmp.lt.s32.totalorder %v68, 2
    %vm89 = vcmp.lt.s32.totalorder %v68, 3
    %vm90 = vcmp.lt.s32.totalorder %v68, 4
    %v91 = vsel %vm87, %v71, %v74
    %v92 = vsel %vm90, %v80, 2102212464
    %v93 = vsel %vm89, %v77, %v92
    %v94 = vsel %vm88, %v91, %v93
    %v95 = vsel %vm87, %v74, %v77
    %v96 = vsel %vm90, %v83, 920167782
    %v97 = vsel %vm89, %v80, %v96
    %v98 = vsel %vm88, %v95, %v97
    %v99 = vsel %vm87, %v77, %v80
    %v100 = vsel %vm90, %v86, 1326507024
    %v101 = vsel %vm89, %v83, %v100
    %v102 = vsel %vm88, %v99, %v101
    %v103 = vshll.u32 %v63, 8
    %v104 = vmul.u32.u64.compose %v103, %v102
    %v105 = vextract.low.u32 %v104
    %v106 = vextract.high.u32 %v104
    %v107 = vmul.u32.u64.compose %v103, %v98
    %v108 = vextract.low.u32 %v107
    %v109 = vextract.high.u32 %v107
    %v110 = vmul.u32 %v103, %v94
    %v111 = vadd.s32 %v106, %v108
    %vm112 = vc.u32 %v106, %v108
    %v113 = vadd.s32 %v109, 1
    %v114 = vsel %vm112, %v113, %v109
    %v115 = vadd.s32 %v110, %v114
    %v116 = vadd.s32 %v115, 536870912
    %v117 = vshrl.u32 %v116, 30
    %v118 = vshll.u32 %v117, 30
    %v119 = vsub.s32 %v115, %v118
    %vm120 = vcmp.lt.s32.totalorder %v119, 0
    %v121 = vsub.s32 0, %v119
    %v122 = vsel %vm120, %v121, %v119
    %v123 = vclz %v122
    %v124 = vsub.s32 %v123, 2
    %vm125 = vcmp.gt.s32.totalorder 0, %v124
    %v126 = vsel %vm125, 0, %v124
    %v127 = vsub.s32 32, %v126
    %v128 = vshll.u32 %v119, %v126
    %v129 = vshrl.u32 %v111, %v127
    %v130 = vor.u32 %v128, %v129
    %v131 = vsub.s32 4294967266, %v126
    %v132 = vadd.s32 %v131, 127
    %v133 = vshll.u32 %v132, 23
    %v134 = vor.u32 4788187, %v133
    %v135 = vand.u32 2147483647, %v134
    %v137 = vcvt.s32.f32 %v130
    %v138 = vmul.f32 %v137, %v135
    %v139 = vxor.u32 %v138, 2147483648
    %v140 = vsel %vm57, %v139, %v138
    %v141 = vsub.s32 4, %v117
    %v142 = vsel %vm57, %v141, %v117
    %v143 = vsel %vm56, %v54, %v140
    %v144 = vsel %vm56, 0, %v142
    %v145 = vcosq.f32.pop %v143
    %v146 = vsinq.f32.pop %v143
    %vm147 = vweird.f32 %v54
    %v148 = vadd.s32 %v144, 3
    %v149 = vand.u32 %v148, 3
    %vm150 = vcmp.lt.s32.totalorder %v149, 2
    %vm151 = vcmp.eq.s32.totalorder %v149, 0
    %v152 = vxor.u32 %v146, 2147483648
    %v153 = vsel %vm151, %v145, %v152
    %vm154 = vcmp.eq.s32.totalorder %v149, 2
    %v155 = vxor.u32 %v145, 2147483648
    %v156 = vsel %vm154, %v155, %v146
    %v157 = vsel %vm150, %v153, %v156
    %v158 = vsel %vm147, nan, %v157
    %v159 = vlaneseq
    %v160 = vshrl.u32 %v159, 7
    %v161 = vsub.s32 1, %v160
    %v162 = vrot.slane %v36, %v161
    %v163 = vmul.f32 %v162, %v46
    %v164 = vadd.f32 %v163, %v52
    %v165 = vand.u32 2147483647, %v164
    %vm166 = vcmp.le.f32.partialorder %v165, 0.7853982
    %vm167 = vcmp.lt.s32.totalorder %v164, 0
    %v168 = vand.u32 %v164, 2139095040
    %v169 = vshrl.u32 %v168, 23
    %v170 = vsub.s32 %v169, 127
    %v171 = vand.u32 2147483647, %v164
    %v172 = vand.u32 %v171, 8388607
    %v173 = vor.u32 %v172, 8388608
    %v174 = vsub.s32 0, %v173
    %v175 = vadd.s32 %v170, 1
    %vm176 = vcmp.gt.s32.totalorder %v175, 0
    %v177 = vsel %vm176, %v175, 0
    %v178 = vshrl.u32 %v177, 5
    %v179 = vand.u32 %v177, 31
    %v180 = vsub.s32 32, %v179
    %v181 = vshrl.u32 683565275, %v180
    %v182 = vshll.u32 683565275, %v179
    %v183 = vshrl.u32 2475754826, %v180
    %v184 = vor.u32 %v182, %v183
    %v185 = vshll.u32 2475754826, %v179
    %v186 = vshrl.u32 2131351028, %v180
    %v187 = vor.u32 %v185, %v186
    %v188 = vshll.u32 2131351028, %v179
    %v189 = vshrl.u32 2102212464, %v180
    %v190 = vor.u32 %v188, %v189
    %v191 = vshll.u32 2102212464, %v179
    %v192 = vshrl.u32 920167782, %v180
    %v193 = vor.u32 %v191, %v192
    %v194 = vshll.u32 920167782, %v179
    %v195 = vshrl.u32 1326507024, %v180
    %v196 = vor.u32 %v194, %v195
    %vm197 = vcmp.lt.s32.totalorder %v178, 1
    %vm198 = vcmp.lt.s32.totalorder %v178, 2
    %vm199 = vcmp.lt.s32.totalorder %v178, 3
    %vm200 = vcmp.lt.s32.totalorder %v178, 4
    %v201 = vsel %vm197, %v181, %v184
    %v202 = vsel %vm200, %v190, 2102212464
    %v203 = vsel %vm199, %v187, %v202
    %v204 = vsel %vm198, %v201, %v203
    %v205 = vsel %vm197, %v184, %v187
    %v206 = vsel %vm200, %v193, 920167782
    %v207 = vsel %vm199, %v190, %v206
    %v208 = vsel %vm198, %v205, %v207
    %v209 = vsel %vm197, %v187, %v190
    %v210 = vsel %vm200, %v196, 1326507024
    %v211 = vsel %vm199, %v193, %v210
    %v212 = vsel %vm198, %v209, %v211
    %v213 = vshll.u32 %v173, 8
    %v214 = vmul.u32.u64.compose %v213, %v212
    %v215 = vextract.low.u32 %v214
    %v216 = vextract.high.u32 %v214
    %v217 = vmul.u32.u64.compose %v213, %v208
    %v218 = vextract.low.u32 %v217
    %v219 = vextract.high.u32 %v217
    %v220 = vmul.u32 %v213, %v204
    %v221 = vadd.s32 %v216, %v218
    %vm222 = vc.u32 %v216, %v218
    %v223 = vadd.s32 %v219, 1
    %v224 = vsel %vm222, %v223, %v219
    %v225 = vadd.s32 %v220, %v224
    %v226 = vadd.s32 %v225, 536870912
    %v227 = vshrl.u32 %v226, 30
    %v228 = vshll.u32 %v227, 30
    %v229 = vsub.s32 %v225, %v228
    %vm230 = vcmp.lt.s32.totalorder %v229, 0
    %v231 = vsub.s32 0, %v229
    %v232 = vsel %vm230, %v231, %v229
    %v233 = vclz %v232
    %v234 = vsub.s32 %v233, 2
    %vm235 = vcmp.gt.s32.totalorder 0, %v234
    %v236 = vsel %vm235, 0, %v234
    %v237 = vsub.s32 32, %v236
    %v238 = vshll.u32 %v229, %v236
    %v239 = vshrl.u32 %v221, %v237
    %v240 = vor.u32 %v238, %v239
    %v241 = vsub.s32 4294967266, %v236
    %v242 = vadd.s32 %v241, 127
    %v243 = vshll.u32 %v242, 23
    %v244 = vor.u32 4788187, %v243
    %v245 = vand.u32 2147483647, %v244
    %v247 = vcvt.s32.f32 %v240
    %v248 = vmul.f32 %v247, %v245
    %v249 = vxor.u32 %v248, 2147483648
    %v250 = vsel %vm167, %v249, %v248
    %v251 = vsub.s32 4, %v227
    %v252 = vsel %vm167, %v251, %v227
    %v253 = vsel %vm166, %v164, %v250
    %v254 = vsel %vm166, 0, %v252
    %v255 = vcosq.f32.pop %v253
    %v256 = vsinq.f32.pop %v253
    %vm257 = vweird.f32 %v164
    %v258 = vadd.s32 %v254, 3
    %v259 = vand.u32 %v258, 3
    %vm260 = vcmp.lt.s32.totalorder %v259, 2
    %vm261 = vcmp.eq.s32.totalorder %v259, 0
    %v262 = vxor.u32 %v256, 2147483648
    %v263 = vsel %vm261, %v255, %v262
    %vm264 = vcmp.eq.s32.totalorder %v259, 2
    %v265 = vxor.u32 %v255, 2147483648
    %v266 = vsel %vm264, %v265, %v256
    %v267 = vsel %vm260, %v263, %v266
    %v268 = vsel %vm257, nan, %v267
    %v269 = vld [vmem:[%s3] sm:$0xff]
    %v270 = vld [vmem:[%s3 + $0x8] sm:$0xff]
    %v271 = vld [vmem:[%s3 + $0x10] sm:$0xff]
    %v272 = vld [vmem:[%s3 + $0x18] sm:$0xff]
    %v273 = vld [vmem:[%s4] sm:$0xff]
    %v274 = vld [vmem:[%s4 + $0x8] sm:$0xff]
    %v275 = vld [vmem:[%s4 + $0x10] sm:$0xff]
    %v276 = vld [vmem:[%s4 + $0x18] sm:$0xff]
    %v277 = vld [vmem:[%s5] sm:$0xff]
    %v278 = vld [vmem:[%s5 + $0x8] sm:$0xff]
    %v279 = vld [vmem:[%s5 + $0x10] sm:$0xff]
    %v280 = vld [vmem:[%s5 + $0x18] sm:$0xff]
    %282 = vset.pattern.permute.xlu0 0
    %283 = vperm.xlu0 %282, %v277
    %v284 = vpop.permute.xlu0 %283
    %287 = vset.pattern.permute.xlu0 0
    %288 = vperm.xlu0 %287, %v278
    %v289 = vpop.permute.xlu0 %288
    %292 = vset.pattern.permute.xlu0 0
    %293 = vperm.xlu0 %292, %v279
    %v294 = vpop.permute.xlu0 %293
    %297 = vset.pattern.permute.xlu0 0
    %298 = vperm.xlu0 %297, %v280
    %v299 = vpop.permute.xlu0 %298
    %vm301 = vcmask 130048
    %v303 = vsel %vm301, %v273, 0
    %v306 = vsel %vm301, %v274, 0
    %v309 = vsel %vm301, %v275, 0
    %v312 = vsel %vm301, %v276, 0
    %314 = vmatprep.subr.mxu0 0.0
    %315 = vmatpush1.msra.mxu0 0.0
    %316 = vmatprep.subr.mxu0 0.0
    %317 = vmatpush1.msra.mxu0 0.0
    %318 = vmatprep.subr.mxu0 0.0
    %319 = vmatpush1.msra.mxu0 0.0
    %320 = vmatprep.subr.mxu0 0.0
    %321 = vmatpush1.msra.mxu0 0.0
    %322 = vmatprep.subr.mxu0 0.0
    %323 = vmatpush1.msra.mxu0 0.0
    %324 = vmatprep.subr.mxu0 0.0
    %325 = vmatpush1.msra.mxu0 0.0
    %326 = vmatprep.subr.mxu0 0.0
    %327 = vmatpush1.msra.mxu0 0.0
    %328 = vmatprep.subr.mxu0 0.0
    %329 = vmatpush1.msra.mxu0 0.0
    %330 = vmatprep.subr.mxu0 0.0
    %331 = vmatpush1.msra.mxu0 0.0
    %332 = vmatprep.subr.mxu0 0.0
    %333 = vmatpush1.msra.mxu0 0.0
    %334 = vmatprep.subr.mxu0 0.0
    %335 = vmatpush1.msra.mxu0 0.0
    %336 = vmatprep.subr.mxu0 0.0
    %337 = vmatpush1.msra.mxu0 0.0
    %338 = vmatprep.subr.mxu0 0.0
    %339 = vmatpush1.msra.mxu0 0.0
    %340 = vmatprep.subr.mxu0 0.0
    %341 = vmatpush1.msra.mxu0 0.0
    %342 = vmatprep.subr.mxu0 0.0
    %343 = vmatpush1.msra.mxu0 %v268
    %344 = vmatprep.subr.mxu0 0.0
    %345 = vmatpush1.msra.mxu0 %v158
    %346 = vmatprep.subr.mxu0 0.0
    %347 = vmatpush2.msra.mxu0 0.0
    %348 = vmatprep.subr.mxu0 0.0
    %349 = vmatpush2.msra.mxu0 0.0
    %350 = vmatprep.subr.mxu0 0.0
    %351 = vmatpush2.msra.mxu0 0.0
    %352 = vmatprep.subr.mxu0 0.0
    %353 = vmatpush2.msra.mxu0 0.0
    %354 = vmatprep.subr.mxu0 0.0
    %355 = vmatpush2.msra.mxu0 0.0
    %356 = vmatprep.subr.mxu0 0.0
    %357 = vmatpush2.msra.mxu0 0.0
    %358 = vmatprep.subr.mxu0 0.0
    %359 = vmatpush2.msra.mxu0 0.0
    %360 = vmatprep.subr.mxu0 0.0
    %361 = vmatpush2.msra.mxu0 0.0
    %362 = vmatprep.subr.mxu0 0.0
    %363 = vmatpush2.msra.mxu0 0.0
    %364 = vmatprep.subr.mxu0 0.0
    %365 = vmatpush2.msra.mxu0 0.0
    %366 = vmatprep.subr.mxu0 0.0
    %367 = vmatpush2.msra.mxu0 0.0
    %368 = vmatprep.subr.mxu0 0.0
    %369 = vmatpush2.msra.mxu0 0.0
    %370 = vmatprep.subr.mxu0 0.0
    %371 = vmatpush2.msra.mxu0 0.0
    %372 = vmatprep.subr.mxu0 0.0
    %373 = vmatpush2.msra.mxu0 0.0
    %374 = vmatprep.subr.mxu0 0.0
    %375 = vmatpush2.msra.mxu0 0.0
    %376 = vmatprep.subr.mxu0 0.0
    %377 = vmatpush2.msra.mxu0 0.0
    %378 = vmatprep.mubr.f32.mxu0 0.0
    %379 = vmatmul.mubr.f32.gmra.mxu0 %v303
    %v380 = vpop.f32.mrf.mxu0
    %v381 = vadd.f32 %v284, %v380
    %v382 = vpop.f32.mrf.mxu0
    %383 = vmatprep.mubr.f32.mxu0 0.0
    %384 = vmatmul.mubr.f32.gmra.mxu0 %v306
    %v385 = vpop.f32.mrf.mxu0
    %v386 = vadd.f32 %v289, %v385
    %v387 = vpop.f32.mrf.mxu0
    %388 = vmatprep.mubr.f32.mxu0 0.0
    %389 = vmatmul.mubr.f32.gmra.mxu0 %v309
    %v390 = vpop.f32.mrf.mxu0
    %v391 = vadd.f32 %v294, %v390
    %v392 = vpop.f32.mrf.mxu0
    %393 = vmatprep.mubr.f32.mxu0 0.0
    %394 = vmatmul.mubr.f32.gmra.mxu0 %v312
    %v395 = vpop.f32.mrf.mxu0
    %v396 = vadd.f32 %v299, %v395
    %v397 = vpop.f32.mrf.mxu0
    %398 = vdwg.mxu0
    %400 = vset.pattern.permute.xlu0 0
    %401 = vperm.xlu0 %400, %v269
    %v402 = vpop.permute.xlu0 %401
    %405 = vset.pattern.permute.xlu0 0
    %406 = vperm.xlu0 %405, %v270
    %v407 = vpop.permute.xlu0 %406
    %410 = vset.pattern.permute.xlu0 0
    %411 = vperm.xlu0 %410, %v271
    %v412 = vpop.permute.xlu0 %411
    %415 = vset.pattern.permute.xlu0 0
    %416 = vperm.xlu0 %415, %v272
    %v417 = vpop.permute.xlu0 %416
    %v419 = vmul.f32 %v402, %v42
    %v420 = vmul.f32 %v407, %v42
    %v421 = vmul.f32 %v412, %v42
    %v422 = vmul.f32 %v417, %v42
    %v423 = vadd.f32 %v381, %v419
    %v424 = vadd.f32 %v386, %v420
    %v425 = vadd.f32 %v391, %v421
    %v426 = vadd.f32 %v396, %v422
    %427 = vset.pattern.permute.xlu0 1
    %428 = vperm.xlu0 %427, %v269
    %v429 = vpop.permute.xlu0 %428
    %431 = vset.pattern.permute.xlu0 1
    %432 = vperm.xlu0 %431, %v270
    %v433 = vpop.permute.xlu0 %432
    %435 = vset.pattern.permute.xlu0 1
    %436 = vperm.xlu0 %435, %v271
    %v437 = vpop.permute.xlu0 %436
    %439 = vset.pattern.permute.xlu0 1
    %440 = vperm.xlu0 %439, %v272
    %v441 = vpop.permute.xlu0 %440
    %v443 = vmul.f32 %v429, %v162
    %v444 = vmul.f32 %v433, %v162
    %v445 = vmul.f32 %v437, %v162
    %v446 = vmul.f32 %v441, %v162
    %v447 = vadd.f32 %v423, %v443
    %v448 = vadd.f32 %v424, %v444
    %v449 = vadd.f32 %v425, %v445
    %v450 = vadd.f32 %v426, %v446
    %v451 = vmax.f32 %v447, 0.0
    %v452 = vmax.f32 %v448, 0.0
    %v453 = vmax.f32 %v449, 0.0
    %v454 = vmax.f32 %v450, 0.0
    %v455 = vld [vmem:[%s6] sm:$0xff]
    %v456 = vld [vmem:[%s6 + $0x8] sm:$0xff]
    %v457 = vld [vmem:[%s6 + $0x10] sm:$0xff]
    %v458 = vld [vmem:[%s6 + $0x18] sm:$0xff]
    %v459 = vld [vmem:[%s7] sm:$0xff]
    %v460 = vld [vmem:[%s7 + $0x8] sm:$0xff]
    %v461 = vld [vmem:[%s7 + $0x10] sm:$0xff]
    %v462 = vld [vmem:[%s7 + $0x18] sm:$0xff]
    %464 = vset.pattern.permute.xlu0 0
    %465 = vperm.xlu0 %464, %v459
    %v466 = vpop.permute.xlu0 %465
    %469 = vset.pattern.permute.xlu0 0
    %470 = vperm.xlu0 %469, %v460
    %v471 = vpop.permute.xlu0 %470
    %474 = vset.pattern.permute.xlu0 0
    %475 = vperm.xlu0 %474, %v461
    %v476 = vpop.permute.xlu0 %475
    %479 = vset.pattern.permute.xlu0 0
    %480 = vperm.xlu0 %479, %v462
    %v481 = vpop.permute.xlu0 %480
    %vm483 = vcmask 261120
    %v485 = vsel %vm483, %v455, 0
    %v488 = vsel %vm483, %v456, 0
    %v491 = vsel %vm483, %v457, 0
    %v494 = vsel %vm483, %v458, 0
    %496 = vmatprep.subr.mxu0 0.0
    %497 = vmatpush1.msra.mxu0 0.0
    %498 = vmatprep.subr.mxu0 0.0
    %499 = vmatpush1.msra.mxu0 0.0
    %500 = vmatprep.subr.mxu0 0.0
    %501 = vmatpush1.msra.mxu0 0.0
    %502 = vmatprep.subr.mxu0 0.0
    %503 = vmatpush1.msra.mxu0 0.0
    %504 = vmatprep.subr.mxu0 0.0
    %505 = vmatpush1.msra.mxu0 0.0
    %506 = vmatprep.subr.mxu0 0.0
    %507 = vmatpush1.msra.mxu0 0.0
    %508 = vmatprep.subr.mxu0 0.0
    %509 = vmatpush1.msra.mxu0 0.0
    %510 = vmatprep.subr.mxu0 0.0
    %511 = vmatpush1.msra.mxu0 0.0
    %512 = vmatprep.subr.mxu0 0.0
    %513 = vmatpush1.msra.mxu0 0.0
    %514 = vmatprep.subr.mxu0 0.0
    %515 = vmatpush1.msra.mxu0 0.0
    %516 = vmatprep.subr.mxu0 0.0
    %517 = vmatpush1.msra.mxu0 0.0
    %518 = vmatprep.subr.mxu0 0.0
    %519 = vmatpush1.msra.mxu0 0.0
    %520 = vmatprep.subr.mxu0 0.0
    %521 = vmatpush1.msra.mxu0 %v454
    %522 = vmatprep.subr.mxu0 0.0
    %523 = vmatpush1.msra.mxu0 %v453
    %524 = vmatprep.subr.mxu0 0.0
    %525 = vmatpush1.msra.mxu0 %v452
    %526 = vmatprep.subr.mxu0 0.0
    %527 = vmatpush1.msra.mxu0 %v451
    %528 = vmatprep.subr.mxu0 0.0
    %529 = vmatpush2.msra.mxu0 0.0
    %530 = vmatprep.subr.mxu0 0.0
    %531 = vmatpush2.msra.mxu0 0.0
    %532 = vmatprep.subr.mxu0 0.0
    %533 = vmatpush2.msra.mxu0 0.0
    %534 = vmatprep.subr.mxu0 0.0
    %535 = vmatpush2.msra.mxu0 0.0
    %536 = vmatprep.subr.mxu0 0.0
    %537 = vmatpush2.msra.mxu0 0.0
    %538 = vmatprep.subr.mxu0 0.0
    %539 = vmatpush2.msra.mxu0 0.0
    %540 = vmatprep.subr.mxu0 0.0
    %541 = vmatpush2.msra.mxu0 0.0
    %542 = vmatprep.subr.mxu0 0.0
    %543 = vmatpush2.msra.mxu0 0.0
    %544 = vmatprep.subr.mxu0 0.0
    %545 = vmatpush2.msra.mxu0 0.0
    %546 = vmatprep.subr.mxu0 0.0
    %547 = vmatpush2.msra.mxu0 0.0
    %548 = vmatprep.subr.mxu0 0.0
    %549 = vmatpush2.msra.mxu0 0.0
    %550 = vmatprep.subr.mxu0 0.0
    %551 = vmatpush2.msra.mxu0 0.0
    %552 = vmatprep.subr.mxu0 0.0
    %553 = vmatpush2.msra.mxu0 0.0
    %554 = vmatprep.subr.mxu0 0.0
    %555 = vmatpush2.msra.mxu0 0.0
    %556 = vmatprep.subr.mxu0 0.0
    %557 = vmatpush2.msra.mxu0 0.0
    %558 = vmatprep.subr.mxu0 0.0
    %559 = vmatpush2.msra.mxu0 0.0
    %560 = vmatprep.mubr.f32.mxu0 0.0
    %561 = vmatmul.mubr.f32.gmra.mxu0 %v485
    %v562 = vpop.f32.mrf.mxu0
    %v563 = vadd.f32 %v466, %v562
    %v564 = vpop.f32.mrf.mxu0
    %565 = vmatprep.mubr.f32.mxu0 0.0
    %566 = vmatmul.mubr.f32.gmra.mxu0 %v488
    %v567 = vpop.f32.mrf.mxu0
    %v568 = vadd.f32 %v471, %v567
    %v569 = vpop.f32.mrf.mxu0
    %570 = vmatprep.mubr.f32.mxu0 0.0
    %571 = vmatmul.mubr.f32.gmra.mxu0 %v491
    %v572 = vpop.f32.mrf.mxu0
    %v573 = vadd.f32 %v476, %v572
    %v574 = vpop.f32.mrf.mxu0
    %575 = vmatprep.mubr.f32.mxu0 0.0
    %576 = vmatmul.mubr.f32.gmra.mxu0 %v494
    %v577 = vpop.f32.mrf.mxu0
    %v578 = vadd.f32 %v481, %v577
    %v579 = vpop.f32.mrf.mxu0
    %580 = vdwg.mxu0
    %v581 = vmax.f32 %v563, 0.0
    %v582 = vmax.f32 %v568, 0.0
    %v583 = vmax.f32 %v573, 0.0
    %v584 = vmax.f32 %v578, 0.0
    %v585 = vld [vmem:[%s8] sm:$0xff]
    %v586 = vld [vmem:[%s8 + $0x8] sm:$0xff]
    %v587 = vld [vmem:[%s8 + $0x10] sm:$0xff]
    %v588 = vld [vmem:[%s8 + $0x18] sm:$0xff]
    %v589 = vld [vmem:[%s9] sm:$0xff]
    %v590 = vld [vmem:[%s9 + $0x8] sm:$0xff]
    %v591 = vld [vmem:[%s9 + $0x10] sm:$0xff]
    %v592 = vld [vmem:[%s9 + $0x18] sm:$0xff]
    %594 = vset.pattern.permute.xlu0 0
    %595 = vperm.xlu0 %594, %v589
    %v596 = vpop.permute.xlu0 %595
    %599 = vset.pattern.permute.xlu0 0
    %600 = vperm.xlu0 %599, %v590
    %v601 = vpop.permute.xlu0 %600
    %604 = vset.pattern.permute.xlu0 0
    %605 = vperm.xlu0 %604, %v591
    %v606 = vpop.permute.xlu0 %605
    %609 = vset.pattern.permute.xlu0 0
    %610 = vperm.xlu0 %609, %v592
    %v611 = vpop.permute.xlu0 %610
    %v614 = vsel %vm483, %v585, 0
    %v617 = vsel %vm483, %v586, 0
    %v620 = vsel %vm483, %v587, 0
    %v623 = vsel %vm483, %v588, 0
    %625 = vmatprep.subr.mxu0 0.0
    %626 = vmatpush1.msra.mxu0 0.0
    %627 = vmatprep.subr.mxu0 0.0
    %628 = vmatpush1.msra.mxu0 0.0
    %629 = vmatprep.subr.mxu0 0.0
    %630 = vmatpush1.msra.mxu0 0.0
    %631 = vmatprep.subr.mxu0 0.0
    %632 = vmatpush1.msra.mxu0 0.0
    %633 = vmatprep.subr.mxu0 0.0
    %634 = vmatpush1.msra.mxu0 0.0
    %635 = vmatprep.subr.mxu0 0.0
    %636 = vmatpush1.msra.mxu0 0.0
    %637 = vmatprep.subr.mxu0 0.0
    %638 = vmatpush1.msra.mxu0 0.0
    %639 = vmatprep.subr.mxu0 0.0
    %640 = vmatpush1.msra.mxu0 0.0
    %641 = vmatprep.subr.mxu0 0.0
    %642 = vmatpush1.msra.mxu0 0.0
    %643 = vmatprep.subr.mxu0 0.0
    %644 = vmatpush1.msra.mxu0 0.0
    %645 = vmatprep.subr.mxu0 0.0
    %646 = vmatpush1.msra.mxu0 0.0
    %647 = vmatprep.subr.mxu0 0.0
    %648 = vmatpush1.msra.mxu0 0.0
    %649 = vmatprep.subr.mxu0 0.0
    %650 = vmatpush1.msra.mxu0 %v584
    %651 = vmatprep.subr.mxu0 0.0
    %652 = vmatpush1.msra.mxu0 %v583
    %653 = vmatprep.subr.mxu0 0.0
    %654 = vmatpush1.msra.mxu0 %v582
    %655 = vmatprep.subr.mxu0 0.0
    %656 = vmatpush1.msra.mxu0 %v581
    %657 = vmatprep.subr.mxu0 0.0
    %658 = vmatpush2.msra.mxu0 0.0
    %659 = vmatprep.subr.mxu0 0.0
    %660 = vmatpush2.msra.mxu0 0.0
    %661 = vmatprep.subr.mxu0 0.0
    %662 = vmatpush2.msra.mxu0 0.0
    %663 = vmatprep.subr.mxu0 0.0
    %664 = vmatpush2.msra.mxu0 0.0
    %665 = vmatprep.subr.mxu0 0.0
    %666 = vmatpush2.msra.mxu0 0.0
    %667 = vmatprep.subr.mxu0 0.0
    %668 = vmatpush2.msra.mxu0 0.0
    %669 = vmatprep.subr.mxu0 0.0
    %670 = vmatpush2.msra.mxu0 0.0
    %671 = vmatprep.subr.mxu0 0.0
    %672 = vmatpush2.msra.mxu0 0.0
    %673 = vmatprep.subr.mxu0 0.0
    %674 = vmatpush2.msra.mxu0 0.0
    %675 = vmatprep.subr.mxu0 0.0
    %676 = vmatpush2.msra.mxu0 0.0
    %677 = vmatprep.subr.mxu0 0.0
    %678 = vmatpush2.msra.mxu0 0.0
    %679 = vmatprep.subr.mxu0 0.0
    %680 = vmatpush2.msra.mxu0 0.0
    %681 = vmatprep.subr.mxu0 0.0
    %682 = vmatpush2.msra.mxu0 0.0
    %683 = vmatprep.subr.mxu0 0.0
    %684 = vmatpush2.msra.mxu0 0.0
    %685 = vmatprep.subr.mxu0 0.0
    %686 = vmatpush2.msra.mxu0 0.0
    %687 = vmatprep.subr.mxu0 0.0
    %688 = vmatpush2.msra.mxu0 0.0
    %689 = vmatprep.mubr.f32.mxu0 0.0
    %690 = vmatmul.mubr.f32.gmra.mxu0 %v614
    %v691 = vpop.f32.mrf.mxu0
    %v692 = vadd.f32 %v596, %v691
    %v693 = vpop.f32.mrf.mxu0
    %694 = vmatprep.mubr.f32.mxu0 0.0
    %695 = vmatmul.mubr.f32.gmra.mxu0 %v617
    %v696 = vpop.f32.mrf.mxu0
    %v697 = vadd.f32 %v601, %v696
    %v698 = vpop.f32.mrf.mxu0
    %699 = vmatprep.mubr.f32.mxu0 0.0
    %700 = vmatmul.mubr.f32.gmra.mxu0 %v620
    %v701 = vpop.f32.mrf.mxu0
    %v702 = vadd.f32 %v606, %v701
    %v703 = vpop.f32.mrf.mxu0
    %704 = vmatprep.mubr.f32.mxu0 0.0
    %705 = vmatmul.mubr.f32.gmra.mxu0 %v623
    %v706 = vpop.f32.mrf.mxu0
    %v707 = vadd.f32 %v611, %v706
    %v708 = vpop.f32.mrf.mxu0
    %709 = vdwg.mxu0
    %710 = vst [vmem:[#allocation2] sm:$0xff] %v692
    %711 = vst [vmem:[#allocation2 + $0x8] sm:$0xff] %v697
    %712 = vst [vmem:[#allocation2 + $0x10] sm:$0xff] %v702
    %713 = vst [vmem:[#allocation2 + $0x18] sm:$0xff] %v707
    // Predicated region
    $region42: #{tpu_custom_call.1} parent=1 // pred_check
      _
    $region43: #{tpu_custom_call.1} parent=1 // pred_check_branch
      %715 = sbr.rel (0) target = $region45
    $region44: #{tpu_custom_call.1} parent=1 // pred_region
      %s717 = ssub.s32 512, 512
      %718 = vsyncadd [#allocation3], %s717
      %s719 = sshll.u32 [#allocation2], 4
      %s720 = int_to_ptr.vmem [resolvable:$true] %s719
      %725 = dma.vmem_to_hbm [thread:$0]  %s720, 512, %s10, [#allocation3], 128, 128, 8
    $region45: #{tpu_custom_call.1} parent=1 // pred_fallthru
      _
    // Predicated region
    $region46: #{tpu_custom_call.1} parent=1 // pred_check
      _
    $region47: #{tpu_custom_call.1} parent=1 // pred_check_branch
      %727 = sbr.rel (0) target = $region49
    $region48: #{tpu_custom_call.1} parent=1 // pred_region
      %728 = dma.done [#allocation3], 512
    $region49: #{tpu_custom_call.1} parent=1 // pred_fallthru
      _
    %729 = vsyncpa [#allocation3], 1

</llo_original>
